<compile_context>
chip_gen: v5e
topology: v5e:2x2
jax: 0.10.0
libtpu: 0.0.40
codegen_flags: <defaults>
</compile_context>

<pallas_src>
import jax
import jax.numpy as jnp
from jax.experimental import pallas as pl
from jax.experimental.pallas import tpu as pltpu


# ----------------------------------------------------------------------------
# VMEM planning
# ----------------------------------------------------------------------------
def _vmem_plan():
    """Returns (tile_budget_bytes, vmem_limit_bytes, prefer_even_steps)."""
    cap = None
    try:
        cap = getattr(pltpu.get_tpu_info(), "vmem_capacity_bytes", None)
    except Exception:
        cap = None
    if cap is None:
        cap = 64 * 1024 * 1024                      # conservative: v7x per-TC VMEM
    if cap >= 96 * 1024 * 1024:                     # 128 MiB parts: v5e / v6e (1 TC)
        return 80 * 1024 * 1024, 96 * 1024 * 1024, False
    # 64 MiB parts (v7x, 2 TCs): keep headroom, keep grid-step count even.
    return 40 * 1024 * 1024, 48 * 1024 * 1024, True


def _pick_tile_n(out_dim: int, k_dim: int, n_rows: int,
                 w_itemsize: int, out_itemsize: int, resident_bytes: int,
                 budget_bytes: int, prefer_even_steps: bool) -> int:
    """Largest multiple-of-128 out_dim tile whose double-buffered working set
    (streamed weight+bias+output tiles + resident inputs/intermediates) fits
    the budget.  Falls back to a single full block if out_dim isn't a multiple
    of 128 (keeps the (8,128) BlockSpec rule satisfied via full-dim blocks)."""
    if out_dim <= 128 or out_dim % 128 != 0:
        return out_dim

    def footprint(tn):
        streamed = 2 * tn * (k_dim * w_itemsize       # w2 / emb tile
                             + 4                      # b2 tile (f32)
                             + n_rows * out_itemsize)  # output tile
        return streamed + 2 * resident_bytes

    tn = min(out_dim, 32768)
    tn = max(128, (tn // 128) * 128)
    while tn > 128 and footprint(tn) > budget_bytes:
        tn -= 128
    if prefer_even_steps:
        # Even step count -> balanced split across the 2 TensorCores (v7x).
        while tn > 128 and pl.cdiv(out_dim, tn) > 1 and pl.cdiv(out_dim, tn) % 2 == 1:
            tn -= 128
    return max(tn, 128)


# ----------------------------------------------------------------------------
# Kernels
# ----------------------------------------------------------------------------
def _fused_prefix_kernel(ids_ref, emb_ref, w1_ref, b1_ref, w2_ref, b2_ref, out_ref):
    """Per out_dim tile:
         h   = tanh(onehot(ids) @ emb @ w1 + b1)     (tiny recompute, hidden)
         out = h @ w2_tile + b2_tile                 (dominant, w2 streamed)
       All matmuls accumulate in f32 on the MXU."""
    ids = ids_ref[...]                                       # (N, 1) int32
    n = ids.shape[0]
    vocab = emb_ref.shape[0]
    iota = jax.lax.broadcasted_iota(jnp.int32, (n, vocab), 1)
    onehot = (iota == ids).astype(emb_ref.dtype)             # (N, V)
    tokens = jnp.dot(onehot, emb_ref[...],
                     preferred_element_type=jnp.float32)     # (N, H) f32
    h = jnp.tanh(jnp.dot(tokens.astype(w1_ref.dtype), w1_ref[...],
                         preferred_element_type=jnp.float32) + b1_ref[...])
    out = (jnp.dot(h.astype(w2_ref.dtype), w2_ref[...],
                   preferred_element_type=jnp.float32) + b2_ref[...])
    out_ref[...] = out.astype(out_ref.dtype)


def _embed_tiled_kernel(ids_ref, emb_ref, out_ref):
    """Non-projection path, per out_dim tile: one-hot gather of emb columns."""
    ids = ids_ref[...]                                       # (N, 1) int32
    n = ids.shape[0]
    vocab = emb_ref.shape[0]
    iota = jax.lax.broadcasted_iota(jnp.int32, (n, vocab), 1)
    onehot = (iota == ids).astype(emb_ref.dtype)
    out_ref[...] = jnp.dot(onehot, emb_ref[...],
                           preferred_element_type=jnp.float32).astype(out_ref.dtype)


# ----------------------------------------------------------------------------
# Module-equivalent wrapper
# ----------------------------------------------------------------------------
class PrefixEncoder:
    def __init__(self, pre_seq_len: int = 20, prefix_hidden_size: int = 0,
                 hidden_size: int = 1024, num_hidden_layers: int = 24,
                 key=None, weight_dtype=jnp.bfloat16, out_dtype=jnp.float32):
        if key is None:
            key = jax.random.PRNGKey(0)
        self.pre_seq_len = pre_seq_len
        self.prefix_hidden_size = prefix_hidden_size
        self.hidden_size = hidden_size
        self.num_hidden_layers = num_hidden_layers
        self.out_dim = num_hidden_layers * 2 * hidden_size
        self.prefix_projection = prefix_hidden_size > 0
        self.weight_dtype = weight_dtype
        self.out_dtype = out_dtype

        k0, k1, k2, k3, k4 = jax.random.split(key, 5)
        if self.prefix_projection:
            self.embedding = (jax.random.normal(k0, (pre_seq_len, hidden_size),
                                                jnp.float32) * 0.02).astype(weight_dtype)
            # Linear weights stored as (in, out) so the kernel computes x @ W + b.
            self.w1 = (jax.random.normal(k1, (hidden_size, prefix_hidden_size),
                                         jnp.float32) * 0.02).astype(weight_dtype)
            self.b1 = (jax.random.normal(k2, (1, prefix_hidden_size),
                                         jnp.float32) * 0.02)
            self.w2 = (jax.random.normal(k3, (prefix_hidden_size, self.out_dim),
                                         jnp.float32) * 0.02).astype(weight_dtype)
            self.b2 = (jax.random.normal(k4, (1, self.out_dim),
                                         jnp.float32) * 0.02)
        else:
            self.embedding = (jax.random.normal(k0, (pre_seq_len, self.out_dim),
                                                jnp.float32) * 0.02).astype(weight_dtype)

    def __call__(self, prefix: jax.Array) -> jax.Array:
        """prefix: (batch, prefix_len) int -> (batch, prefix_len, 2*L*H)."""
        b, plen = prefix.shape
        n = b * plen
        ids = prefix.reshape(n, 1).astype(jnp.int32)
        out_dim = self.out_dim

        budget, vmem_limit, even_steps = _vmem_plan()
        w_itemsize = jnp.dtype(self.weight_dtype).itemsize
        out_itemsize = jnp.dtype(self.out_dtype).itemsize

        if self.prefix_projection:
            V, H, P = self.pre_seq_len, self.hidden_size, self.prefix_hidden_size
            # Resident inputs + in-kernel intermediates (onehot / tokens / h).
            resident = (n * 4 + V * H * w_itemsize + H * P * w_itemsize + P * 4
                        + n * (V * w_itemsize + (H + P) * 4))
            tn = _pick_tile_n(out_dim, P, n, w_itemsize, out_itemsize,
                              resident, budget, even_steps)
            steps = pl.cdiv(out_dim, tn)
            cost = pl.CostEstimate(
                flops=2 * n * P * out_dim + steps * 2 * n * (V * H + H * P),
                transcendentals=steps * n * P,
                bytes_accessed=(P * out_dim * w_itemsize      # w2 stream (dominant)
                                + n * out_dim * out_itemsize  # output
                                + out_dim * 4                 # b2
                                + resident))
            out = pl.pallas_call(
                _fused_prefix_kernel,
                out_shape=jax.ShapeDtypeStruct((n, out_dim), self.out_dtype),
                grid=(steps,),
                in_specs=[
                    pl.BlockSpec((n, 1), lambda j: (0, 0)),    # ids       (resident)
                    pl.BlockSpec((V, H), lambda j: (0, 0)),    # embedding (resident)
                    pl.BlockSpec((H, P), lambda j: (0, 0)),    # w1        (resident)
                    pl.BlockSpec((1, P), lambda j: (0, 0)),    # b1        (resident)
                    pl.BlockSpec((P, tn), lambda j: (0, j)),   # w2        (streamed)
                    pl.BlockSpec((1, tn), lambda j: (0, j)),   # b2        (streamed)
                ],
                out_specs=pl.BlockSpec((n, tn), lambda j: (0, j)),
                compiler_params=pltpu.CompilerParams(
                    dimension_semantics=("parallel",),
                    vmem_limit_bytes=vmem_limit),
                cost_estimate=cost,
            )(ids, self.embedding, self.w1, self.b1, self.w2, self.b2)
        else:
            V = self.pre_seq_len
            resident = n * 4 + n * V * w_itemsize
            tn = _pick_tile_n(out_dim, V, n, w_itemsize, out_itemsize,
                              resident, budget, even_steps)
            steps = pl.cdiv(out_dim, tn)
            out = pl.pallas_call(
                _embed_tiled_kernel,
                out_shape=jax.ShapeDtypeStruct((n, out_dim), self.out_dtype),
                grid=(steps,),
                in_specs=[
                    pl.BlockSpec((n, 1), lambda j: (0, 0)),    # ids       (resident)
                    pl.BlockSpec((V, tn), lambda j: (0, j)),   # embedding (streamed)
                ],
                out_specs=pl.BlockSpec((n, tn), lambda j: (0, j)),
                compiler_params=pltpu.CompilerParams(
                    dimension_semantics=("parallel",),
                    vmem_limit_bytes=vmem_limit),
            )(ids, self.embedding)

        # Rows == b*plen (no padding), so this reshape is a metadata no-op.
        return out.reshape(b, plen, out_dim)

    # Pure-JAX reference (f32 math on the stored weights) for verification.
    def reference(self, prefix: jax.Array) -> jax.Array:
        emb = self.embedding.astype(jnp.float32)
        tokens = jnp.take(emb, prefix.astype(jnp.int32), axis=0)
        if self.prefix_projection:
            h = jnp.tanh(tokens @ self.w1.astype(jnp.float32) + self.b1)
            return h @ self.w2.astype(jnp.float32) + self.b2
        return tokens


# ----------------------------------------------------------------------------
if __name__ == "__main__":
    # Small shapes: pre_seq_len=16, prefix_hidden=32, hidden=32, layers=2
    # -> output feature dim = 2 * 2 * 32 = 128.
    batch, prefix_len = 2, 8
    pre_seq_len, prefix_hidden, hidden, layers = 16, 32, 32, 2

    key = jax.random.PRNGKey(0)
    k_ids, k_params = jax.random.split(key)
    prefix = jax.random.randint(k_ids, (batch, prefix_len), 0, pre_seq_len,
                                dtype=jnp.int32)

    # Projection path, f32 weights -> tight check.
    enc_f32 = PrefixEncoder(pre_seq_len=pre_seq_len,
                            prefix_hidden_size=prefix_hidden,
                            hidden_size=hidden,
                            num_hidden_layers=layers,
                            key=k_params,
                            weight_dtype=jnp.float32)
    out = jax.block_until_ready(enc_f32(prefix))
    ref = enc_f32.reference(prefix)
    assert out.shape == (batch, prefix_len, 2 * layers * hidden)
    assert jnp.allclose(out, ref, atol=1e-5, rtol=1e-5)

    # Projection path with the default bf16-streamed weights (halves w2 bytes).
    enc_bf = PrefixEncoder(pre_seq_len=pre_seq_len,
                           prefix_hidden_size=prefix_hidden,
                           hidden_size=hidden,
                           num_hidden_layers=layers,
                           key=k_params)
    out_bf = jax.block_until_ready(enc_bf(prefix))
    ref_bf = enc_bf.reference(prefix)
    assert out_bf.shape == (batch, prefix_len, 2 * layers * hidden)
    assert jnp.allclose(out_bf, ref_bf, atol=5e-3, rtol=5e-2)

    # No-projection path (pure embedding lookup); bf16 storage is exact here.
    enc_emb = PrefixEncoder(pre_seq_len=pre_seq_len,
                            prefix_hidden_size=0,
                            hidden_size=hidden,
                            num_hidden_layers=layers,
                            key=k_params)
    out_e = jax.block_until_ready(enc_emb(prefix))
    ref_e = enc_emb.reference(prefix)
    assert out_e.shape == (batch, prefix_len, 2 * layers * hidden)
    assert jnp.allclose(out_e, ref_e, atol=1e-6, rtol=1e-6)

    print("KERNEL_OK")
</pallas_src>

<mosaic_0001>
module attributes {stable_mosaic.version = 11 : i64} {
  func.func @_fused_prefix_kernel(%arg0: i32, %arg1: memref<16x1xi32, #tpu.memory_space<vmem>>, %arg2: memref<16x32xf32, #tpu.memory_space<vmem>>, %arg3: memref<32x32xf32, #tpu.memory_space<vmem>>, %arg4: memref<1x32xf32, #tpu.memory_space<vmem>>, %arg5: memref<32x128xf32, #tpu.memory_space<vmem>>, %arg6: memref<1x128xf32, #tpu.memory_space<vmem>>, %arg7: memref<16x128xf32, #tpu.memory_space<vmem>>) attributes {dimension_semantics = [#tpu.dimension_semantics<parallel>], iteration_bounds = array<i64: 1>, scalar_prefetch = 0 : i64, scratch_operands = 0 : i64, tpu.core_type = #tpu.core_type<tc>, window_params = [{pipeline_mode = #tpu.pipeline_mode<synchronous>, transform_indices = @transform_0, window_bounds = array<i64: 16, 1>}, {pipeline_mode = #tpu.pipeline_mode<synchronous>, transform_indices = @transform_1, window_bounds = array<i64: 16, 32>}, {pipeline_mode = #tpu.pipeline_mode<synchronous>, transform_indices = @transform_2, window_bounds = array<i64: 32, 32>}, {pipeline_mode = #tpu.pipeline_mode<synchronous>, transform_indices = @transform_3, window_bounds = array<i64: 1, 32>}, {transform_indices = @transform_4, window_bounds = array<i64: 32, 128>}, {transform_indices = @transform_5, window_bounds = array<i64: 1, 128>}, {transform_indices = @transform_6, window_bounds = array<i64: 16, 128>}]} {
    %c0 = arith.constant 0 : index
    %c0_0 = arith.constant 0 : index
    %0 = vector.load %arg1[%c0, %c0_0] : memref<16x1xi32, #tpu.memory_space<vmem>>, vector<16x1xi32>
    %1 = tpu.iota {dimensions = array<i32: 1>} : vector<16x16xi32>
    %2 = vector.broadcast %0 : vector<16x1xi32> to vector<16x16xi32>
    %3 = arith.cmpi eq, %1, %2 : vector<16x16xi32>
    %4 = arith.extui %3 : vector<16x16xi1> to vector<16x16xi32>
    %5 = arith.sitofp %4 : vector<16x16xi32> to vector<16x16xf32>
    %c0_1 = arith.constant 0 : index
    %c0_2 = arith.constant 0 : index
    %6 = vector.load %arg2[%c0_1, %c0_2] : memref<16x32xf32, #tpu.memory_space<vmem>>, vector<16x32xf32>
    %cst = arith.constant dense<0.000000e+00> : vector<16x32xf32>
    %7 = tpu.matmul %5, %6, %cst {dimension_numbers = #tpu.dot_dimension_numbers<[1], [0], [0], [1], [0, 0, 1, 1], [], []>} : vector<16x16xf32>, vector<16x32xf32>, vector<16x32xf32> -> vector<16x32xf32>
    %c0_3 = arith.constant 0 : index
    %c0_4 = arith.constant 0 : index
    %8 = vector.load %arg3[%c0_3, %c0_4] : memref<32x32xf32, #tpu.memory_space<vmem>>, vector<32x32xf32>
    %cst_5 = arith.constant dense<0.000000e+00> : vector<16x32xf32>
    %9 = tpu.matmul %7, %8, %cst_5 {dimension_numbers = #tpu.dot_dimension_numbers<[1], [0], [0], [1], [0, 0, 1, 1], [], []>} : vector<16x32xf32>, vector<32x32xf32>, vector<16x32xf32> -> vector<16x32xf32>
    %c0_6 = arith.constant 0 : index
    %c0_7 = arith.constant 0 : index
    %10 = vector.load %arg4[%c0_6, %c0_7] : memref<1x32xf32, #tpu.memory_space<vmem>>, vector<1x32xf32>
    %11 = vector.broadcast %10 : vector<1x32xf32> to vector<16x32xf32>
    %12 = arith.addf %9, %11 : vector<16x32xf32>
    %13 = math.tanh %12 : vector<16x32xf32>
    %c0_8 = arith.constant 0 : index
    %c0_9 = arith.constant 0 : index
    %14 = vector.load %arg5[%c0_8, %c0_9] : memref<32x128xf32, #tpu.memory_space<vmem>>, vector<32x128xf32>
    %cst_10 = arith.constant dense<0.000000e+00> : vector<16x128xf32>
    %15 = tpu.matmul %13, %14, %cst_10 {dimension_numbers = #tpu.dot_dimension_numbers<[1], [0], [0], [1], [0, 0, 1, 1], [], []>} : vector<16x32xf32>, vector<32x128xf32>, vector<16x128xf32> -> vector<16x128xf32>
    %c0_11 = arith.constant 0 : index
    %c0_12 = arith.constant 0 : index
    %16 = vector.load %arg6[%c0_11, %c0_12] : memref<1x128xf32, #tpu.memory_space<vmem>>, vector<1x128xf32>
    %17 = vector.broadcast %16 : vector<1x128xf32> to vector<16x128xf32>
    %18 = arith.addf %15, %17 : vector<16x128xf32>
    %c0_13 = arith.constant 0 : index
    %c0_14 = arith.constant 0 : index
    %19 = vector.load %arg7[%c0_13, %c0_14] : memref<16x128xf32, #tpu.memory_space<vmem>>, vector<16x128xf32>
    tpu.vector_store %arg7[%c0_13, %c0_14], %18 {strides = array<i32>} : memref<16x128xf32, #tpu.memory_space<vmem>>, vector<16x128xf32>,
    return
  }
  func.func @transform_0(%arg0: i32) -> (i32, i32) {
    %c0_i32 = arith.constant 0 : i32
    %c0_i32_0 = arith.constant 0 : i32
    %c0_i32_1 = arith.constant 0 : i32
    return %c0_i32, %c0_i32_0 : i32, i32
  }
  func.func @transform_1(%arg0: i32) -> (i32, i32) {
    %c0_i32 = arith.constant 0 : i32
    %c0_i32_0 = arith.constant 0 : i32
    %c0_i32_1 = arith.constant 0 : i32
    return %c0_i32, %c0_i32_0 : i32, i32
  }
  func.func @transform_2(%arg0: i32) -> (i32, i32) {
    %c0_i32 = arith.constant 0 : i32
    %c0_i32_0 = arith.constant 0 : i32
    %c0_i32_1 = arith.constant 0 : i32
    return %c0_i32, %c0_i32_0 : i32, i32
  }
  func.func @transform_3(%arg0: i32) -> (i32, i32) {
    %c0_i32 = arith.constant 0 : i32
    %c0_i32_0 = arith.constant 0 : i32
    %c0_i32_1 = arith.constant 0 : i32
    return %c0_i32, %c0_i32_0 : i32, i32
  }
  func.func @transform_4(%arg0: i32) -> (i32, i32) {
    %c0_i32 = arith.constant 0 : i32
    %c0_i32_0 = arith.constant 0 : i32
    return %c0_i32, %arg0 : i32, i32
  }
  func.func @transform_5(%arg0: i32) -> (i32, i32) {
    %c0_i32 = arith.constant 0 : i32
    %c0_i32_0 = arith.constant 0 : i32
    return %c0_i32, %arg0 : i32, i32
  }
  func.func @transform_6(%arg0: i32) -> (i32, i32) {
    %c0_i32 = arith.constant 0 : i32
    %c0_i32_0 = arith.constant 0 : i32
    return %c0_i32, %arg0 : i32, i32
  }
}

</mosaic_0001>

<llo_original>
// kernel: tpu_custom_call.1
$region0: #{tpu_custom_call.1}
  #allocation0 [shape = 'u32[]', space=smem, size = 0x4, offset = 0x4, fixed_abs, tag = 'smem constant byte address 0x4 - core index']
  #allocation1 [shape = 'u32[72,128]{1,0:T(1,128)}', space=vmem, size = 0x9000, scoped, tag = 'internal scratch']
  %s0 = inlined_call_operand.vmem [shape: s32[16,1], index: 0, kind: input, shape index: {}]
  %s1 = inlined_call_operand.vmem [shape: f32[16,32], index: 1, kind: input, shape index: {}]
  %s2 = inlined_call_operand.hbm [shape: f32[32,32], index: 2, kind: input, shape index: {}]
  %s3 = inlined_call_operand.vmem [shape: f32[1,32], index: 3, kind: input, shape index: {}]
  %s4 = inlined_call_operand.hbm [shape: f32[32,128], index: 4, kind: input, shape index: {}]
  %s5 = inlined_call_operand.vmem [shape: f32[1,128], index: 5, kind: input, shape index: {}]
  %s6 = inlined_call_operand.hbm [shape: f32[16,128], index: 6, kind: output, shape index: {}]
  %s7 = sld [smem:[#allocation0]]
  $region42: #{tpu_custom_call.1} parent=0
    _
  %s9 = ssub.s32 1, %s7
  %s10 = scalar_select 0, %s9, %s7
  $region1: #{tpu_custom_call.1} parent=0
    #allocation2 [shape = 'u8[16384]{0}', space=vmem, size = 0x4000, scoped, tag = 'input window, operand 2, single buffered']
    #allocation3 [shape = 's32[1]{0}', space=sflag, size = 0x4, scoped, tag = 'scoped memory for tpu_custom_call.1']
    #allocation4 [shape = 's32[1]{0}', space=sflag, size = 0x4, scoped, tag = 'scoped memory for tpu_custom_call.1']
    #allocation5 [shape = 'u8[16384]{0}', space=vmem, size = 0x4000, scoped, tag = 'input window, operand 4, single buffered']
    #allocation6 [shape = 's32[1]{0}', space=sflag, size = 0x4, scoped, tag = 'scoped memory for tpu_custom_call.1']
    #allocation7 [shape = 'u8[8192]{0}', space=vmem, size = 0x2000, scoped, tag = 'output window, operand 0, single buffered']
    %11 = vsyncpa [#allocation3], 0
    %12 = vsyncpa [#allocation6], 0
    %13 = vsyncpa [#allocation4], 0
    // Predicated region
    $region2: #{tpu_custom_call.1} parent=1 // pred_check
      _
    $region3: #{tpu_custom_call.1} parent=1 // pred_check_branch
      %15 = sbr.rel (0) target = $region5
    $region4: #{tpu_custom_call.1} parent=1 // pred_region
      _
    $region5: #{tpu_custom_call.1} parent=1 // pred_fallthru
      _
    // Predicated region
    $region6: #{tpu_custom_call.1} parent=1 // pred_check
      _
    $region7: #{tpu_custom_call.1} parent=1 // pred_check_branch
      %17 = sbr.rel (0) target = $region9
    $region8: #{tpu_custom_call.1} parent=1 // pred_region
      _
    $region9: #{tpu_custom_call.1} parent=1 // pred_fallthru
      _
    // Predicated region
    $region10: #{tpu_custom_call.1} parent=1 // pred_check
      _
    $region11: #{tpu_custom_call.1} parent=1 // pred_check_branch
      %19 = sbr.rel (0) target = $region13
    $region12: #{tpu_custom_call.1} parent=1 // pred_region
      %21 = vsyncadd [#allocation3], 0
      %s22 = sshll.u32 %s2, 4
      %s23 = int_to_ptr.hbm [resolvable:$true] %s22
      %s24 = sshll.u32 [#allocation2], 4
      %s25 = int_to_ptr.vmem [resolvable:$true] %s24
      %30 = dma.hbm_to_vmem [thread:$0]  %s23, 512, %s25, [#allocation3], 128, 128, 8
    $region13: #{tpu_custom_call.1} parent=1 // pred_fallthru
      _
    // Predicated region
    $region14: #{tpu_custom_call.1} parent=1 // pred_check
      _
    $region15: #{tpu_custom_call.1} parent=1 // pred_check_branch
      %32 = sbr.rel (0) target = $region17
    $region16: #{tpu_custom_call.1} parent=1 // pred_region
      _
    $region17: #{tpu_custom_call.1} parent=1 // pred_fallthru
      _
    // Predicated region
    $region18: #{tpu_custom_call.1} parent=1 // pred_check
      _
    $region19: #{tpu_custom_call.1} parent=1 // pred_check_branch
      %34 = sbr.rel (0) target = $region21
    $region20: #{tpu_custom_call.1} parent=1 // pred_region
      %36 = vsyncadd [#allocation6], 0
      %s37 = sshll.u32 %s4, 4
      %s38 = int_to_ptr.hbm [resolvable:$true] %s37
      %s39 = sshll.u32 [#allocation5], 4
      %s40 = int_to_ptr.vmem [resolvable:$true] %s39
      %45 = dma.hbm_to_vmem [thread:$0]  %s38, 512, %s40, [#allocation6], 128, 128, 8
    $region21: #{tpu_custom_call.1} parent=1 // pred_fallthru
      _
    // Predicated region
    $region22: #{tpu_custom_call.1} parent=1 // pred_check
      _
    $region23: #{tpu_custom_call.1} parent=1 // pred_check_branch
      %47 = sbr.rel (0) target = $region25
    $region24: #{tpu_custom_call.1} parent=1 // pred_region
      _
    $region25: #{tpu_custom_call.1} parent=1 // pred_fallthru
      _
    // Predicated region
    $region26: #{tpu_custom_call.1} parent=1 // pred_check
      _
    $region27: #{tpu_custom_call.1} parent=1 // pred_check_branch
      %49 = sbr.rel (0) target = $region29
    $region28: #{tpu_custom_call.1} parent=1 // pred_region
      %51 = dma.done [#allocation3], 512
    $region29: #{tpu_custom_call.1} parent=1 // pred_fallthru
      _
    // Predicated region
    $region30: #{tpu_custom_call.1} parent=1 // pred_check
      _
    $region31: #{tpu_custom_call.1} parent=1 // pred_check_branch
      %53 = sbr.rel (0) target = $region33
    $region32: #{tpu_custom_call.1} parent=1 // pred_region
      %55 = dma.done [#allocation6], 512
    $region33: #{tpu_custom_call.1} parent=1 // pred_fallthru
      _
    %v56 = vld [vmem:[%s0] sm:$0xff]
    %v57 = vld [vmem:[%s0 + $0x8] sm:$0xff]
    %v58 = vlaneseq
    %v59 = vand.u32 %v58, 127
    %60 = vset.pattern.permute.xlu0 0
    %61 = vperm.xlu0 %60, %v56
    %v62 = vpop.permute.xlu0 %61
    %63 = vset.pattern.permute.xlu0 0
    %64 = vperm.xlu0 %63, %v57
    %v65 = vpop.permute.xlu0 %64
    %vm66 = vcmp.eq.s32.totalorder %v59, %v62
    %vm67 = vcmp.eq.s32.totalorder %v59, %v65
    %v68 = vsel %vm66, 1, 0
    %v69 = vsel %vm67, 1, 0
    %v70 = vcvt.s32.f32 %v68
    %v71 = vcvt.s32.f32 %v69
    %v72 = vld [vmem:[%s1] sm:$0xff]
    %v73 = vld [vmem:[%s1 + $0x8] sm:$0xff]
    %vm74 = vcmask 130048
    %v76 = vsel %vm74, %v70, 0
    %v79 = vsel %vm74, %v71, 0
    %81 = vmatpush.msra.mxu0 0.0
    %82 = vmatpush.msra.mxu0 0.0
    %83 = vmatpush.msra.mxu0 0.0
    %84 = vmatpush.msra.mxu0 0.0
    %85 = vmatpush.msra.mxu0 0.0
    %86 = vmatpush.msra.mxu0 0.0
    %87 = vmatpush.msra.mxu0 0.0
    %88 = vmatpush.msra.mxu0 0.0
    %89 = vmatpush.msra.mxu0 0.0
    %90 = vmatpush.msra.mxu0 0.0
    %91 = vmatpush.msra.mxu0 0.0
    %92 = vmatpush.msra.mxu0 0.0
    %93 = vmatpush.msra.mxu0 0.0
    %94 = vmatpush.msra.mxu0 0.0
    %95 = vmatpush.msra.mxu0 %v73
    %96 = vmatpush.msra.mxu0 %v72
    %97 = vmatmul.f32.gmra.mxu0 %v76
    %v98 = vpop.f32.mrf.mxu0
    %v99 = vadd.f32 0.0, %v98
    %100 = vmatmul.f32.gmra.mxu0 %v79
    %v101 = vpop.f32.mrf.mxu0
    %v102 = vadd.f32 0.0, %v101
    %103 = vdwg.mxu0
    %v104 = vld [vmem:[#allocation2] sm:$0xff]
    %v105 = vld [vmem:[#allocation2 + $0x8] sm:$0xff]
    %v106 = vld [vmem:[#allocation2 + $0x10] sm:$0xff]
    %v107 = vld [vmem:[#allocation2 + $0x18] sm:$0xff]
    %v108 = vld [vmem:[%s3] sm:$0x1]
    %v110 = vperm.slane %v108, 0
    %vm112 = vcmask 261120
    %v114 = vsel %vm112, %v99, 0
    %v117 = vsel %vm112, %v102, 0
    %119 = vmatpush.msra.mxu0 0.0
    %120 = vmatpush.msra.mxu0 0.0
    %121 = vmatpush.msra.mxu0 0.0
    %122 = vmatpush.msra.mxu0 0.0
    %123 = vmatpush.msra.mxu0 0.0
    %124 = vmatpush.msra.mxu0 0.0
    %125 = vmatpush.msra.mxu0 0.0
    %126 = vmatpush.msra.mxu0 0.0
    %127 = vmatpush.msra.mxu0 0.0
    %128 = vmatpush.msra.mxu0 0.0
    %129 = vmatpush.msra.mxu0 0.0
    %130 = vmatpush.msra.mxu0 0.0
    %131 = vmatpush.msra.mxu0 %v107
    %132 = vmatpush.msra.mxu0 %v106
    %133 = vmatpush.msra.mxu0 %v105
    %134 = vmatpush.msra.mxu0 %v104
    %135 = vmatmul.f32.gmra.mxu0 %v114
    %v136 = vpop.f32.mrf.mxu0
    %v137 = vadd.f32 %v110, %v136
    %138 = vmatmul.f32.gmra.mxu0 %v117
    %v139 = vpop.f32.mrf.mxu0
    %v140 = vadd.f32 %v110, %v139
    %141 = vdwg.mxu0
    %v142 = vtanh.pop %v137
    %v143 = vtanh.pop %v140
    %v144 = vld [vmem:[#allocation5] sm:$0xff]
    %v145 = vld [vmem:[#allocation5 + $0x8] sm:$0xff]
    %v146 = vld [vmem:[#allocation5 + $0x10] sm:$0xff]
    %v147 = vld [vmem:[#allocation5 + $0x18] sm:$0xff]
    %v148 = vld [vmem:[%s5] sm:$0x1]
    %v150 = vperm.slane %v148, 0
    %v153 = vsel %vm112, %v142, 0
    %v156 = vsel %vm112, %v143, 0
    %158 = vmatpush.msra.mxu0 0.0
    %159 = vmatpush.msra.mxu0 0.0
    %160 = vmatpush.msra.mxu0 0.0
    %161 = vmatpush.msra.mxu0 0.0
    %162 = vmatpush.msra.mxu0 0.0
    %163 = vmatpush.msra.mxu0 0.0
    %164 = vmatpush.msra.mxu0 0.0
    %165 = vmatpush.msra.mxu0 0.0
    %166 = vmatpush.msra.mxu0 0.0
    %167 = vmatpush.msra.mxu0 0.0
    %168 = vmatpush.msra.mxu0 0.0
    %169 = vmatpush.msra.mxu0 0.0
    %170 = vmatpush.msra.mxu0 %v147
    %171 = vmatpush.msra.mxu0 %v146
    %172 = vmatpush.msra.mxu0 %v145
    %173 = vmatpush.msra.mxu0 %v144
    %174 = vmatmul.f32.gmra.mxu0 %v153
    %v175 = vpop.f32.mrf.mxu0
    %v176 = vadd.f32 %v150, %v175
    %177 = vmatmul.f32.gmra.mxu0 %v156
    %v178 = vpop.f32.mrf.mxu0
    %v179 = vadd.f32 %v150, %v178
    %180 = vdwg.mxu0
    %181 = vst [vmem:[#allocation7] sm:$0xff] %v176
    %182 = vst [vmem:[#allocation7 + $0x8] sm:$0xff] %v179
    // Predicated region
    $region34: #{tpu_custom_call.1} parent=1 // pred_check
      _
    $region35: #{tpu_custom_call.1} parent=1 // pred_check_branch
      %184 = sbr.rel (0) target = $region37
    $region36: #{tpu_custom_call.1} parent=1 // pred_region
      %186 = vsyncadd [#allocation4], 0
      %s187 = sshll.u32 [#allocation7], 4
      %s188 = int_to_ptr.vmem [resolvable:$true] %s187
      %s189 = sshll.u32 %s6, 4
      %s190 = int_to_ptr.hbm [resolvable:$true] %s189
      %195 = dma.vmem_to_hbm [thread:$0]  %s188, 256, %s190, [#allocation4], 128, 128, 8
    $region37: #{tpu_custom_call.1} parent=1 // pred_fallthru
      _
    // Predicated region
    $region38: #{tpu_custom_call.1} parent=1 // pred_check
      _
    $region39: #{tpu_custom_call.1} parent=1 // pred_check_branch
      %197 = sbr.rel (0) target = $region41
    $region40: #{tpu_custom_call.1} parent=1 // pred_region
      %199 = dma.done [#allocation4], 256
    $region41: #{tpu_custom_call.1} parent=1 // pred_fallthru
      _
    %200 = vsyncpa [#allocation3], 1
    %201 = vsyncpa [#allocation6], 1
    %202 = vsyncpa [#allocation4], 1

</llo_original>
